<compile_context>
chip_gen: v7x
topology: tpu7x:2x2x1
jax: 0.10.0
libtpu: 0.0.40
codegen_flags: <defaults>
</compile_context>

<pallas_src>
import functools

import jax
import jax.numpy as jnp
from jax.experimental import pallas as pl
from jax.experimental.pallas import tpu as pltpu

_BN_EPS = 1e-5
_ROW_ALIGN = 16   # bf16 packs 2 rows per sublane -> keep weight blocks 16-row aligned


def _round_up(n, m):
    return ((n + m - 1) // m) * m


def _pack_weight_layout(blocks):
    """Row offsets (16-aligned) of each weight block inside one packed bf16 slab."""
    layout, off = {}, 0
    for name, r, c in blocks:
        layout[name] = (off, r, c)
        off += _round_up(r, _ROW_ALIGN)
    width = max(c for _, _, c in blocks)
    return layout, _round_up(off, _ROW_ALIGN), width


def _pack_vec_layout(rows):
    """One row per per-feature vector (bias / BN gamma / BN beta) in one f32 slab."""
    layout = {name: (i, c) for i, (name, c) in enumerate(rows)}
    width = max(c for _, c in rows)
    return layout, len(rows), width


def _cencoder_kernel(ww_layout, wn_layout, vw_layout, vn_layout, H2, L,
                     x_ref, y_ref, noise_ref, ww_ref, wn_ref, vw_ref, vn_ref,
                     z_ref, kl_ref):
    def wblk(ref, layout, name):
        off, r, c = layout[name]
        return ref[off:off + r, 0:c]                  # static slice, already bf16

    def vrow(ref, layout, name):
        row, c = layout[name]
        return ref[row:row + 1, 0:c]                  # static [1, c] f32 slice

    def dot(a, ref, layout, name):
        # bf16 x bf16 on the MXU with f32 accumulation; elementwise math stays f32.
        return jnp.dot(a.astype(jnp.bfloat16), wblk(ref, layout, name),
                       preferred_element_type=jnp.float32)

    dot_w = lambda a, name: dot(a, ww_ref, ww_layout, name)   # H-wide blocks
    dot_n = lambda a, name: dot(a, wn_ref, wn_layout, name)   # H2 / 2L-wide blocks
    vw = lambda name: vrow(vw_ref, vw_layout, name)
    vn = lambda name: vrow(vn_ref, vn_layout, name)

    def bn(t, gamma, beta):
        # PyTorch training-mode BatchNorm1d: batch mean, biased batch variance.
        mu = jnp.mean(t, axis=0, keepdims=True)
        # One-pass E[x^2] - mu^2, clamped at 0 so rsqrt never sees a negative value
        # produced by f32 cancellation when |mu| >> sigma.
        var = jnp.maximum(jnp.mean(t * t, axis=0, keepdims=True) - mu * mu, 0.0)
        scale = gamma * jax.lax.rsqrt(var + _BN_EPS)
        shift = beta - mu * scale
        return t * scale + shift

    relu = lambda t: jnp.maximum(t, 0.0)

    x = x_ref[...]
    y = y_ref[...]

    # fc1 + relu (concat avoided: two partial dots sharing the output tile)
    h = relu(dot_w(x, "fc1_x") + dot_w(y, "fc1_y") + vw("fc1_b"))

    # NOTE: linear biases feeding a training-mode BN cancel exactly and are omitted.

    # residual block 1 (H -> H, identity shortcut)
    o = relu(bn(dot_w(h, "r1_w1"), vw("r1_g1"), vw("r1_be1")))
    o = bn(dot_w(o, "r1_w2"), vw("r1_g2"), vw("r1_be2"))
    h = relu(o + h)

    # residual block 2 (H -> H//2, Linear+BN projection shortcut).
    # Main-branch fc1 and the shortcut Linear share input h -> one merged dot; both
    # BatchNorms are per-column, so a single BN over the merged [B, 2*H2] is exact.
    m = bn(dot_w(h, "r2_w1ws"), vw("r2_g1gs"), vw("r2_be1bes"))
    o = relu(m[:, 0:H2])
    sc = m[:, H2:2 * H2]
    o = bn(dot_n(o, "r2_w2"), vn("r2_g2"), vn("r2_be2"))
    h = relu(o + sc)

    # residual block 3 (H//2 -> H//2, identity shortcut)
    o = relu(bn(dot_n(h, "r3_w1"), vn("r3_g1"), vn("r3_be1")))
    o = bn(dot_n(o, "r3_w2"), vn("r3_g2"), vn("r3_be2"))
    h = relu(o + h)

    # fc2: mean | log_var heads merged into one dot, split by static lane slices.
    out = dot_n(h, "fc2") + vn("fc2_b")
    mean = out[:, 0:L]
    log_var = out[:, L:2 * L]
    sigma = jnp.exp(log_var)

    z_ref[...] = mean + sigma * noise_ref[...]
    # TODO(synk): an SMEM (1,1) output would shave a masked 1-lane store; kept in VMEM
    # for robust lowering of the vector->scalar reduction.
    kl_ref[...] = jnp.sum(sigma * sigma + mean * mean - log_var - 0.5, keepdims=True)


def cencoder_forward(x, y, noise, params):
    """x: [B, input_dim], y: [B, n_classes] one-hot, noise: [B, latent_dim]."""
    B = x.shape[0]
    L = params["L"]
    inputs = [x.astype(jnp.float32), y.astype(jnp.float32), noise.astype(jnp.float32),
              params["ww"], params["wn"], params["vw"], params["vn"]]

    # No grid: single invocation, whole arrays resident in VMEM (no pipeline /
    # double-buffering machinery for blocks whose index would be constant anyway).
    # NOTE: batch stays on one TensorCore on purpose — splitting B over a grid axis
    # would break training-mode BatchNorm's full-batch statistics.
    vmem = lambda: pl.BlockSpec(memory_space=pltpu.MemorySpace.VMEM)

    kernel = functools.partial(
        _cencoder_kernel,
        params["ww_layout"], params["wn_layout"],
        params["vw_layout"], params["vn_layout"],
        params["H2"], L)

    z, kl = pl.pallas_call(
        kernel,
        out_shape=(
            jax.ShapeDtypeStruct((B, L), jnp.float32),   # z
            jax.ShapeDtypeStruct((1, 1), jnp.float32),   # kl (scalar)
        ),
        in_specs=[vmem() for _ in inputs],
        out_specs=(vmem(), vmem()),
        # Explicit VMEM budget: keeps the all-weights-resident design portable to
        # v7x (64 MiB physical, 32 MiB default scoped limit) as hidden_dim grows.
        compiler_params=pltpu.CompilerParams(vmem_limit_bytes=32 * 1024 * 1024),
    )(*inputs)
    return z, kl[0, 0]


def init_params(key, input_dim, hidden_dim, latent_dim, n_classes):
    """Packed synthetic parameters, PyTorch-style Linear init; BN gamma=1, beta=0.

    Weights are packed ONCE into two bf16 slabs, split by width so padding is ~0:
      wide   (width H)           : fc1_x, fc1_y, r1_w1, r1_w2, r2_w1|r2_ws (merged)
      narrow (width max(H2, 2L)) : r2_w2, r3_w1, r3_w2, fc2_mean|fc2_logvar (merged)
    Per-feature vectors (surviving biases, BN gamma/beta) go into two f32 slabs.
    """
    H, H2, L, C = hidden_dim, hidden_dim // 2, latent_dim, n_classes

    wide_blocks = [
        ("fc1_x", input_dim, H),
        ("fc1_y", C, H),
        ("r1_w1", H, H),
        ("r1_w2", H, H),
        ("r2_w1ws", H, 2 * H2),       # res_block2 fc1 | shortcut Linear, merged
    ]
    narrow_blocks = [
        ("r2_w2", H2, H2),
        ("r3_w1", H2, H2),
        ("r3_w2", H2, H2),
        ("fc2", H2, 2 * L),           # mean | log_var heads, merged
    ]
    ww_layout, ww_rows, ww_width = _pack_weight_layout(wide_blocks)
    wn_layout, wn_rows, wn_width = _pack_weight_layout(narrow_blocks)

    # PyTorch nn.Linear init: U(-1/sqrt(fan_in), 1/sqrt(fan_in)).
    fan_in = {
        "fc1_x": input_dim + C, "fc1_y": input_dim + C,
        "r1_w1": H, "r1_w2": H,
        "r2_w1ws": H,                 # both merged halves have fan_in H
        "r2_w2": H2, "r3_w1": H2, "r3_w2": H2,
        "fc2": H2,                    # both merged heads have fan_in H2
    }

    keys = iter(jax.random.split(key, 16))

    def fill_slab(layout, rows, width, blocks):
        slab = jnp.zeros((rows, width), jnp.float32)
        for name, _, _ in blocks:
            off, r, c = layout[name]
            lim = 1.0 / (fan_in[name] ** 0.5)
            blk = jax.random.uniform(next(keys), (r, c), jnp.float32, -lim, lim)
            slab = slab.at[off:off + r, 0:c].set(blk)
        return slab.astype(jnp.bfloat16)      # MXU operands are bf16

    ww = fill_slab(ww_layout, ww_rows, ww_width, wide_blocks)
    wn = fill_slab(wn_layout, wn_rows, wn_width, narrow_blocks)

    # Vector slabs stay f32 (they feed the VPU/elementwise path).  Linear biases that
    # feed a training-mode BN cancel exactly and are not materialized.
    vw_rows_spec = [
        ("fc1_b", H),
        ("r1_g1", H), ("r1_be1", H), ("r1_g2", H), ("r1_be2", H),
        ("r2_g1gs", 2 * H2), ("r2_be1bes", 2 * H2),
    ]
    vn_rows_spec = [
        ("r2_g2", H2), ("r2_be2", H2),
        ("r3_g1", H2), ("r3_be1", H2), ("r3_g2", H2), ("r3_be2", H2),
        ("fc2_b", 2 * L),
    ]
    vw_layout, vw_nrows, vw_width = _pack_vec_layout(vw_rows_spec)
    vn_layout, vn_nrows, vn_width = _pack_vec_layout(vn_rows_spec)

    vw = jnp.zeros((vw_nrows, vw_width), jnp.float32)
    vn = jnp.zeros((vn_nrows, vn_width), jnp.float32)

    # Surviving linear biases: fc1 and the merged fc2 heads.
    lim1 = 1.0 / ((input_dim + C) ** 0.5)
    row, c = vw_layout["fc1_b"]
    vw = vw.at[row, 0:c].set(
        jax.random.uniform(next(keys), (c,), jnp.float32, -lim1, lim1))
    lim2 = 1.0 / (H2 ** 0.5)
    row, c = vn_layout["fc2_b"]
    vn = vn.at[row, 0:c].set(
        jax.random.uniform(next(keys), (c,), jnp.float32, -lim2, lim2))

    # BatchNorm affine: gamma = 1 (betas stay 0).
    for name in ("r1_g1", "r1_g2", "r2_g1gs"):
        row, c = vw_layout[name]
        vw = vw.at[row, 0:c].set(1.0)
    for name in ("r2_g2", "r3_g1", "r3_g2"):
        row, c = vn_layout[name]
        vn = vn.at[row, 0:c].set(1.0)

    return {
        "ww": ww, "wn": wn, "vw": vw, "vn": vn,
        "ww_layout": ww_layout, "wn_layout": wn_layout,
        "vw_layout": vw_layout, "vn_layout": vn_layout,
        "H2": H2, "L": L,
    }


if __name__ == "__main__":
    B, input_dim, hidden_dim, latent_dim, n_classes = 8, 16, 32, 8, 4

    key = jax.random.PRNGKey(0)
    kx, ky, kn, kp = jax.random.split(key, 4)

    x = jax.random.normal(kx, (B, input_dim), jnp.float32)
    labels = jax.random.randint(ky, (B,), 0, n_classes)
    y = jax.nn.one_hot(labels, n_classes, dtype=jnp.float32)
    # TODO(synk): torch.distributions.Normal(0,1).sample has no in-kernel torch-RNG
    # equivalent; the reparameterization noise is drawn host-side with jax.random.
    noise = jax.random.normal(kn, (B, latent_dim), jnp.float32)

    params = init_params(kp, input_dim, hidden_dim, latent_dim, n_classes)

    z, kl = cencoder_forward(x, y, noise, params)
    jax.block_until_ready((z, kl))
    assert z.shape == (B, latent_dim)
    assert kl.shape == ()
    assert bool(jnp.all(jnp.isfinite(z))) and bool(jnp.isfinite(kl))
    print("KERNEL_OK")
</pallas_src>

<mosaic_0001>
module attributes {stable_mosaic.version = 11 : i64} {
  func.func @_cencoder_kernel(%arg0: memref<8x16xf32, #tpu.memory_space<vmem>>, %arg1: memref<8x4xf32, #tpu.memory_space<vmem>>, %arg2: memref<8x8xf32, #tpu.memory_space<vmem>>, %arg3: memref<128x32xbf16, #tpu.memory_space<vmem>>, %arg4: memref<64x16xbf16, #tpu.memory_space<vmem>>, %arg5: memref<7x32xf32, #tpu.memory_space<vmem>>, %arg6: memref<7x16xf32, #tpu.memory_space<vmem>>, %arg7: memref<8x8xf32, #tpu.memory_space<vmem>>, %arg8: memref<1x1xf32, #tpu.memory_space<vmem>>) attributes {dimension_semantics = [], scalar_prefetch = 0 : i64, scratch_operands = 0 : i64, tpu.core_type = #tpu.core_type<tc>} {
    %c0 = arith.constant 0 : index
    %c0_0 = arith.constant 0 : index
    %0 = vector.load %arg0[%c0, %c0_0] : memref<8x16xf32, #tpu.memory_space<vmem>>, vector<8x16xf32>
    %c0_1 = arith.constant 0 : index
    %c0_2 = arith.constant 0 : index
    %1 = vector.load %arg1[%c0_1, %c0_2] : memref<8x4xf32, #tpu.memory_space<vmem>>, vector<8x4xf32>
    %2 = arith.truncf %0 : vector<8x16xf32> to vector<8x16xbf16>
    %c0_3 = arith.constant 0 : index
    %c0_4 = arith.constant 0 : index
    %3 = vector.load %arg3[%c0_3, %c0_4] : memref<128x32xbf16, #tpu.memory_space<vmem>>, vector<16x32xbf16>
    %cst = arith.constant dense<0.000000e+00> : vector<8x32xf32>
    %4 = tpu.matmul %2, %3, %cst {dimension_numbers = #tpu.dot_dimension_numbers<[1], [0], [0], [1], [0, 0, 1, 1], [], []>} : vector<8x16xbf16>, vector<16x32xbf16>, vector<8x32xf32> -> vector<8x32xf32>
    %5 = arith.truncf %1 : vector<8x4xf32> to vector<8x4xbf16>
    %c16 = arith.constant 16 : index
    %c0_5 = arith.constant 0 : index
    %6 = vector.load %arg3[%c16, %c0_5] : memref<128x32xbf16, #tpu.memory_space<vmem>>, vector<4x32xbf16>
    %cst_6 = arith.constant dense<0.000000e+00> : vector<8x32xf32>
    %7 = tpu.matmul %5, %6, %cst_6 {dimension_numbers = #tpu.dot_dimension_numbers<[1], [0], [0], [1], [0, 0, 1, 1], [], []>} : vector<8x4xbf16>, vector<4x32xbf16>, vector<8x32xf32> -> vector<8x32xf32>
    %8 = arith.addf %4, %7 : vector<8x32xf32>
    %c0_7 = arith.constant 0 : index
    %c0_8 = arith.constant 0 : index
    %9 = vector.load %arg5[%c0_7, %c0_8] : memref<7x32xf32, #tpu.memory_space<vmem>>, vector<1x32xf32>
    %10 = vector.broadcast %9 : vector<1x32xf32> to vector<8x32xf32>
    %11 = arith.addf %8, %10 : vector<8x32xf32>
    %cst_9 = arith.constant 0.000000e+00 : f32
    %12 = vector.broadcast %cst_9 : f32 to vector<8x32xf32>
    %13 = arith.maximumf %11, %12 : vector<8x32xf32>
    %14 = arith.truncf %13 : vector<8x32xf32> to vector<8x32xbf16>
    %c32 = arith.constant 32 : index
    %c0_10 = arith.constant 0 : index
    %15 = vector.load %arg3[%c32, %c0_10] : memref<128x32xbf16, #tpu.memory_space<vmem>>, vector<32x32xbf16>
    %cst_11 = arith.constant dense<0.000000e+00> : vector<8x32xf32>
    %16 = tpu.matmul %14, %15, %cst_11 {dimension_numbers = #tpu.dot_dimension_numbers<[1], [0], [0], [1], [0, 0, 1, 1], [], []>} : vector<8x32xbf16>, vector<32x32xbf16>, vector<8x32xf32> -> vector<8x32xf32>
    %c1 = arith.constant 1 : index
    %c0_12 = arith.constant 0 : index
    %17 = vector.load %arg5[%c1, %c0_12] : memref<7x32xf32, #tpu.memory_space<vmem>>, vector<1x32xf32>
    %c2 = arith.constant 2 : index
    %c0_13 = arith.constant 0 : index
    %18 = vector.load %arg5[%c2, %c0_13] : memref<7x32xf32, #tpu.memory_space<vmem>>, vector<1x32xf32>
    %cst_14 = arith.constant dense<0.000000e+00> : vector<32xf32>
    %19 = vector.multi_reduction <add>, %16, %cst_14 [0] : vector<8x32xf32> to vector<32xf32>
    %20 = vector.shape_cast %19 : vector<32xf32> to vector<1x32xf32>
    %cst_15 = arith.constant 8.000000e+00 : f32
    %21 = vector.broadcast %cst_15 : f32 to vector<1x32xf32>
    %22 = arith.divf %20, %21 : vector<1x32xf32>
    %23 = arith.mulf %16, %16 : vector<8x32xf32>
    %cst_16 = arith.constant dense<0.000000e+00> : vector<32xf32>
    %24 = vector.multi_reduction <add>, %23, %cst_16 [0] : vector<8x32xf32> to vector<32xf32>
    %25 = vector.shape_cast %24 : vector<32xf32> to vector<1x32xf32>
    %cst_17 = arith.constant 8.000000e+00 : f32
    %26 = vector.broadcast %cst_17 : f32 to vector<1x32xf32>
    %27 = arith.divf %25, %26 : vector<1x32xf32>
    %28 = arith.mulf %22, %22 : vector<1x32xf32>
    %29 = arith.subf %27, %28 : vector<1x32xf32>
    %cst_18 = arith.constant 0.000000e+00 : f32
    %30 = vector.broadcast %cst_18 : f32 to vector<1x32xf32>
    %31 = arith.maximumf %29, %30 : vector<1x32xf32>
    %cst_19 = arith.constant 9.99999974E-6 : f32
    %32 = vector.broadcast %cst_19 : f32 to vector<1x32xf32>
    %33 = arith.addf %31, %32 : vector<1x32xf32>
    %34 = math.rsqrt %33 : vector<1x32xf32>
    %35 = arith.mulf %17, %34 : vector<1x32xf32>
    %36 = arith.mulf %22, %35 : vector<1x32xf32>
    %37 = arith.subf %18, %36 : vector<1x32xf32>
    %38 = vector.broadcast %35 : vector<1x32xf32> to vector<8x32xf32>
    %39 = arith.mulf %16, %38 : vector<8x32xf32>
    %40 = vector.broadcast %37 : vector<1x32xf32> to vector<8x32xf32>
    %41 = arith.addf %39, %40 : vector<8x32xf32>
    %cst_20 = arith.constant 0.000000e+00 : f32
    %42 = vector.broadcast %cst_20 : f32 to vector<8x32xf32>
    %43 = arith.maximumf %41, %42 : vector<8x32xf32>
    %44 = arith.truncf %43 : vector<8x32xf32> to vector<8x32xbf16>
    %c64 = arith.constant 64 : index
    %c0_21 = arith.constant 0 : index
    %45 = vector.load %arg3[%c64, %c0_21] : memref<128x32xbf16, #tpu.memory_space<vmem>>, vector<32x32xbf16>
    %cst_22 = arith.constant dense<0.000000e+00> : vector<8x32xf32>
    %46 = tpu.matmul %44, %45, %cst_22 {dimension_numbers = #tpu.dot_dimension_numbers<[1], [0], [0], [1], [0, 0, 1, 1], [], []>} : vector<8x32xbf16>, vector<32x32xbf16>, vector<8x32xf32> -> vector<8x32xf32>
    %c3 = arith.constant 3 : index
    %c0_23 = arith.constant 0 : index
    %47 = vector.load %arg5[%c3, %c0_23] : memref<7x32xf32, #tpu.memory_space<vmem>>, vector<1x32xf32>
    %c4 = arith.constant 4 : index
    %c0_24 = arith.constant 0 : index
    %48 = vector.load %arg5[%c4, %c0_24] : memref<7x32xf32, #tpu.memory_space<vmem>>, vector<1x32xf32>
    %cst_25 = arith.constant dense<0.000000e+00> : vector<32xf32>
    %49 = vector.multi_reduction <add>, %46, %cst_25 [0] : vector<8x32xf32> to vector<32xf32>
    %50 = vector.shape_cast %49 : vector<32xf32> to vector<1x32xf32>
    %cst_26 = arith.constant 8.000000e+00 : f32
    %51 = vector.broadcast %cst_26 : f32 to vector<1x32xf32>
    %52 = arith.divf %50, %51 : vector<1x32xf32>
    %53 = arith.mulf %46, %46 : vector<8x32xf32>
    %cst_27 = arith.constant dense<0.000000e+00> : vector<32xf32>
    %54 = vector.multi_reduction <add>, %53, %cst_27 [0] : vector<8x32xf32> to vector<32xf32>
    %55 = vector.shape_cast %54 : vector<32xf32> to vector<1x32xf32>
    %cst_28 = arith.constant 8.000000e+00 : f32
    %56 = vector.broadcast %cst_28 : f32 to vector<1x32xf32>
    %57 = arith.divf %55, %56 : vector<1x32xf32>
    %58 = arith.mulf %52, %52 : vector<1x32xf32>
    %59 = arith.subf %57, %58 : vector<1x32xf32>
    %cst_29 = arith.constant 0.000000e+00 : f32
    %60 = vector.broadcast %cst_29 : f32 to vector<1x32xf32>
    %61 = arith.maximumf %59, %60 : vector<1x32xf32>
    %cst_30 = arith.constant 9.99999974E-6 : f32
    %62 = vector.broadcast %cst_30 : f32 to vector<1x32xf32>
    %63 = arith.addf %61, %62 : vector<1x32xf32>
    %64 = math.rsqrt %63 : vector<1x32xf32>
    %65 = arith.mulf %47, %64 : vector<1x32xf32>
    %66 = arith.mulf %52, %65 : vector<1x32xf32>
    %67 = arith.subf %48, %66 : vector<1x32xf32>
    %68 = vector.broadcast %65 : vector<1x32xf32> to vector<8x32xf32>
    %69 = arith.mulf %46, %68 : vector<8x32xf32>
    %70 = vector.broadcast %67 : vector<1x32xf32> to vector<8x32xf32>
    %71 = arith.addf %69, %70 : vector<8x32xf32>
    %72 = arith.addf %71, %13 : vector<8x32xf32>
    %cst_31 = arith.constant 0.000000e+00 : f32
    %73 = vector.broadcast %cst_31 : f32 to vector<8x32xf32>
    %74 = arith.maximumf %72, %73 : vector<8x32xf32>
    %75 = arith.truncf %74 : vector<8x32xf32> to vector<8x32xbf16>
    %c96 = arith.constant 96 : index
    %c0_32 = arith.constant 0 : index
    %76 = vector.load %arg3[%c96, %c0_32] : memref<128x32xbf16, #tpu.memory_space<vmem>>, vector<32x32xbf16>
    %cst_33 = arith.constant dense<0.000000e+00> : vector<8x32xf32>
    %77 = tpu.matmul %75, %76, %cst_33 {dimension_numbers = #tpu.dot_dimension_numbers<[1], [0], [0], [1], [0, 0, 1, 1], [], []>} : vector<8x32xbf16>, vector<32x32xbf16>, vector<8x32xf32> -> vector<8x32xf32>
    %c5 = arith.constant 5 : index
    %c0_34 = arith.constant 0 : index
    %78 = vector.load %arg5[%c5, %c0_34] : memref<7x32xf32, #tpu.memory_space<vmem>>, vector<1x32xf32>
    %c6 = arith.constant 6 : index
    %c0_35 = arith.constant 0 : index
    %79 = vector.load %arg5[%c6, %c0_35] : memref<7x32xf32, #tpu.memory_space<vmem>>, vector<1x32xf32>
    %cst_36 = arith.constant dense<0.000000e+00> : vector<32xf32>
    %80 = vector.multi_reduction <add>, %77, %cst_36 [0] : vector<8x32xf32> to vector<32xf32>
    %81 = vector.shape_cast %80 : vector<32xf32> to vector<1x32xf32>
    %cst_37 = arith.constant 8.000000e+00 : f32
    %82 = vector.broadcast %cst_37 : f32 to vector<1x32xf32>
    %83 = arith.divf %81, %82 : vector<1x32xf32>
    %84 = arith.mulf %77, %77 : vector<8x32xf32>
    %cst_38 = arith.constant dense<0.000000e+00> : vector<32xf32>
    %85 = vector.multi_reduction <add>, %84, %cst_38 [0] : vector<8x32xf32> to vector<32xf32>
    %86 = vector.shape_cast %85 : vector<32xf32> to vector<1x32xf32>
    %cst_39 = arith.constant 8.000000e+00 : f32
    %87 = vector.broadcast %cst_39 : f32 to vector<1x32xf32>
    %88 = arith.divf %86, %87 : vector<1x32xf32>
    %89 = arith.mulf %83, %83 : vector<1x32xf32>
    %90 = arith.subf %88, %89 : vector<1x32xf32>
    %cst_40 = arith.constant 0.000000e+00 : f32
    %91 = vector.broadcast %cst_40 : f32 to vector<1x32xf32>
    %92 = arith.maximumf %90, %91 : vector<1x32xf32>
    %cst_41 = arith.constant 9.99999974E-6 : f32
    %93 = vector.broadcast %cst_41 : f32 to vector<1x32xf32>
    %94 = arith.addf %92, %93 : vector<1x32xf32>
    %95 = math.rsqrt %94 : vector<1x32xf32>
    %96 = arith.mulf %78, %95 : vector<1x32xf32>
    %97 = arith.mulf %83, %96 : vector<1x32xf32>
    %98 = arith.subf %79, %97 : vector<1x32xf32>
    %99 = vector.broadcast %96 : vector<1x32xf32> to vector<8x32xf32>
    %100 = arith.mulf %77, %99 : vector<8x32xf32>
    %101 = vector.broadcast %98 : vector<1x32xf32> to vector<8x32xf32>
    %102 = arith.addf %100, %101 : vector<8x32xf32>
    %103 = vector.extract_strided_slice %102 {offsets = [0, 0], sizes = [8, 16], strides = [1, 1]} : vector<8x32xf32> to vector<8x16xf32>
    %cst_42 = arith.constant 0.000000e+00 : f32
    %104 = vector.broadcast %cst_42 : f32 to vector<8x16xf32>
    %105 = arith.maximumf %103, %104 : vector<8x16xf32>
    %106 = vector.extract_strided_slice %102 {offsets = [0, 16], sizes = [8, 16], strides = [1, 1]} : vector<8x32xf32> to vector<8x16xf32>
    %107 = arith.truncf %105 : vector<8x16xf32> to vector<8x16xbf16>
    %c0_43 = arith.constant 0 : index
    %c0_44 = arith.constant 0 : index
    %108 = vector.load %arg4[%c0_43, %c0_44] : memref<64x16xbf16, #tpu.memory_space<vmem>>, vector<16x16xbf16>
    %cst_45 = arith.constant dense<0.000000e+00> : vector<8x16xf32>
    %109 = tpu.matmul %107, %108, %cst_45 {dimension_numbers = #tpu.dot_dimension_numbers<[1], [0], [0], [1], [0, 0, 1, 1], [], []>} : vector<8x16xbf16>, vector<16x16xbf16>, vector<8x16xf32> -> vector<8x16xf32>
    %c0_46 = arith.constant 0 : index
    %c0_47 = arith.constant 0 : index
    %110 = vector.load %arg6[%c0_46, %c0_47] : memref<7x16xf32, #tpu.memory_space<vmem>>, vector<1x16xf32>
    %c1_48 = arith.constant 1 : index
    %c0_49 = arith.constant 0 : index
    %111 = vector.load %arg6[%c1_48, %c0_49] : memref<7x16xf32, #tpu.memory_space<vmem>>, vector<1x16xf32>
    %cst_50 = arith.constant dense<0.000000e+00> : vector<16xf32>
    %112 = vector.multi_reduction <add>, %109, %cst_50 [0] : vector<8x16xf32> to vector<16xf32>
    %113 = vector.shape_cast %112 : vector<16xf32> to vector<1x16xf32>
    %cst_51 = arith.constant 8.000000e+00 : f32
    %114 = vector.broadcast %cst_51 : f32 to vector<1x16xf32>
    %115 = arith.divf %113, %114 : vector<1x16xf32>
    %116 = arith.mulf %109, %109 : vector<8x16xf32>
    %cst_52 = arith.constant dense<0.000000e+00> : vector<16xf32>
    %117 = vector.multi_reduction <add>, %116, %cst_52 [0] : vector<8x16xf32> to vector<16xf32>
    %118 = vector.shape_cast %117 : vector<16xf32> to vector<1x16xf32>
    %cst_53 = arith.constant 8.000000e+00 : f32
    %119 = vector.broadcast %cst_53 : f32 to vector<1x16xf32>
    %120 = arith.divf %118, %119 : vector<1x16xf32>
    %121 = arith.mulf %115, %115 : vector<1x16xf32>
    %122 = arith.subf %120, %121 : vector<1x16xf32>
    %cst_54 = arith.constant 0.000000e+00 : f32
    %123 = vector.broadcast %cst_54 : f32 to vector<1x16xf32>
    %124 = arith.maximumf %122, %123 : vector<1x16xf32>
    %cst_55 = arith.constant 9.99999974E-6 : f32
    %125 = vector.broadcast %cst_55 : f32 to vector<1x16xf32>
    %126 = arith.addf %124, %125 : vector<1x16xf32>
    %127 = math.rsqrt %126 : vector<1x16xf32>
    %128 = arith.mulf %110, %127 : vector<1x16xf32>
    %129 = arith.mulf %115, %128 : vector<1x16xf32>
    %130 = arith.subf %111, %129 : vector<1x16xf32>
    %131 = vector.broadcast %128 : vector<1x16xf32> to vector<8x16xf32>
    %132 = arith.mulf %109, %131 : vector<8x16xf32>
    %133 = vector.broadcast %130 : vector<1x16xf32> to vector<8x16xf32>
    %134 = arith.addf %132, %133 : vector<8x16xf32>
    %135 = arith.addf %134, %106 : vector<8x16xf32>
    %cst_56 = arith.constant 0.000000e+00 : f32
    %136 = vector.broadcast %cst_56 : f32 to vector<8x16xf32>
    %137 = arith.maximumf %135, %136 : vector<8x16xf32>
    %138 = arith.truncf %137 : vector<8x16xf32> to vector<8x16xbf16>
    %c16_57 = arith.constant 16 : index
    %c0_58 = arith.constant 0 : index
    %139 = vector.load %arg4[%c16_57, %c0_58] : memref<64x16xbf16, #tpu.memory_space<vmem>>, vector<16x16xbf16>
    %cst_59 = arith.constant dense<0.000000e+00> : vector<8x16xf32>
    %140 = tpu.matmul %138, %139, %cst_59 {dimension_numbers = #tpu.dot_dimension_numbers<[1], [0], [0], [1], [0, 0, 1, 1], [], []>} : vector<8x16xbf16>, vector<16x16xbf16>, vector<8x16xf32> -> vector<8x16xf32>
    %c2_60 = arith.constant 2 : index
    %c0_61 = arith.constant 0 : index
    %141 = vector.load %arg6[%c2_60, %c0_61] : memref<7x16xf32, #tpu.memory_space<vmem>>, vector<1x16xf32>
    %c3_62 = arith.constant 3 : index
    %c0_63 = arith.constant 0 : index
    %142 = vector.load %arg6[%c3_62, %c0_63] : memref<7x16xf32, #tpu.memory_space<vmem>>, vector<1x16xf32>
    %cst_64 = arith.constant dense<0.000000e+00> : vector<16xf32>
    %143 = vector.multi_reduction <add>, %140, %cst_64 [0] : vector<8x16xf32> to vector<16xf32>
    %144 = vector.shape_cast %143 : vector<16xf32> to vector<1x16xf32>
    %cst_65 = arith.constant 8.000000e+00 : f32
    %145 = vector.broadcast %cst_65 : f32 to vector<1x16xf32>
    %146 = arith.divf %144, %145 : vector<1x16xf32>
    %147 = arith.mulf %140, %140 : vector<8x16xf32>
    %cst_66 = arith.constant dense<0.000000e+00> : vector<16xf32>
    %148 = vector.multi_reduction <add>, %147, %cst_66 [0] : vector<8x16xf32> to vector<16xf32>
    %149 = vector.shape_cast %148 : vector<16xf32> to vector<1x16xf32>
    %cst_67 = arith.constant 8.000000e+00 : f32
    %150 = vector.broadcast %cst_67 : f32 to vector<1x16xf32>
    %151 = arith.divf %149, %150 : vector<1x16xf32>
    %152 = arith.mulf %146, %146 : vector<1x16xf32>
    %153 = arith.subf %151, %152 : vector<1x16xf32>
    %cst_68 = arith.constant 0.000000e+00 : f32
    %154 = vector.broadcast %cst_68 : f32 to vector<1x16xf32>
    %155 = arith.maximumf %153, %154 : vector<1x16xf32>
    %cst_69 = arith.constant 9.99999974E-6 : f32
    %156 = vector.broadcast %cst_69 : f32 to vector<1x16xf32>
    %157 = arith.addf %155, %156 : vector<1x16xf32>
    %158 = math.rsqrt %157 : vector<1x16xf32>
    %159 = arith.mulf %141, %158 : vector<1x16xf32>
    %160 = arith.mulf %146, %159 : vector<1x16xf32>
    %161 = arith.subf %142, %160 : vector<1x16xf32>
    %162 = vector.broadcast %159 : vector<1x16xf32> to vector<8x16xf32>
    %163 = arith.mulf %140, %162 : vector<8x16xf32>
    %164 = vector.broadcast %161 : vector<1x16xf32> to vector<8x16xf32>
    %165 = arith.addf %163, %164 : vector<8x16xf32>
    %cst_70 = arith.constant 0.000000e+00 : f32
    %166 = vector.broadcast %cst_70 : f32 to vector<8x16xf32>
    %167 = arith.maximumf %165, %166 : vector<8x16xf32>
    %168 = arith.truncf %167 : vector<8x16xf32> to vector<8x16xbf16>
    %c32_71 = arith.constant 32 : index
    %c0_72 = arith.constant 0 : index
    %169 = vector.load %arg4[%c32_71, %c0_72] : memref<64x16xbf16, #tpu.memory_space<vmem>>, vector<16x16xbf16>
    %cst_73 = arith.constant dense<0.000000e+00> : vector<8x16xf32>
    %170 = tpu.matmul %168, %169, %cst_73 {dimension_numbers = #tpu.dot_dimension_numbers<[1], [0], [0], [1], [0, 0, 1, 1], [], []>} : vector<8x16xbf16>, vector<16x16xbf16>, vector<8x16xf32> -> vector<8x16xf32>
    %c4_74 = arith.constant 4 : index
    %c0_75 = arith.constant 0 : index
    %171 = vector.load %arg6[%c4_74, %c0_75] : memref<7x16xf32, #tpu.memory_space<vmem>>, vector<1x16xf32>
    %c5_76 = arith.constant 5 : index
    %c0_77 = arith.constant 0 : index
    %172 = vector.load %arg6[%c5_76, %c0_77] : memref<7x16xf32, #tpu.memory_space<vmem>>, vector<1x16xf32>
    %cst_78 = arith.constant dense<0.000000e+00> : vector<16xf32>
    %173 = vector.multi_reduction <add>, %170, %cst_78 [0] : vector<8x16xf32> to vector<16xf32>
    %174 = vector.shape_cast %173 : vector<16xf32> to vector<1x16xf32>
    %cst_79 = arith.constant 8.000000e+00 : f32
    %175 = vector.broadcast %cst_79 : f32 to vector<1x16xf32>
    %176 = arith.divf %174, %175 : vector<1x16xf32>
    %177 = arith.mulf %170, %170 : vector<8x16xf32>
    %cst_80 = arith.constant dense<0.000000e+00> : vector<16xf32>
    %178 = vector.multi_reduction <add>, %177, %cst_80 [0] : vector<8x16xf32> to vector<16xf32>
    %179 = vector.shape_cast %178 : vector<16xf32> to vector<1x16xf32>
    %cst_81 = arith.constant 8.000000e+00 : f32
    %180 = vector.broadcast %cst_81 : f32 to vector<1x16xf32>
    %181 = arith.divf %179, %180 : vector<1x16xf32>
    %182 = arith.mulf %176, %176 : vector<1x16xf32>
    %183 = arith.subf %181, %182 : vector<1x16xf32>
    %cst_82 = arith.constant 0.000000e+00 : f32
    %184 = vector.broadcast %cst_82 : f32 to vector<1x16xf32>
    %185 = arith.maximumf %183, %184 : vector<1x16xf32>
    %cst_83 = arith.constant 9.99999974E-6 : f32
    %186 = vector.broadcast %cst_83 : f32 to vector<1x16xf32>
    %187 = arith.addf %185, %186 : vector<1x16xf32>
    %188 = math.rsqrt %187 : vector<1x16xf32>
    %189 = arith.mulf %171, %188 : vector<1x16xf32>
    %190 = arith.mulf %176, %189 : vector<1x16xf32>
    %191 = arith.subf %172, %190 : vector<1x16xf32>
    %192 = vector.broadcast %189 : vector<1x16xf32> to vector<8x16xf32>
    %193 = arith.mulf %170, %192 : vector<8x16xf32>
    %194 = vector.broadcast %191 : vector<1x16xf32> to vector<8x16xf32>
    %195 = arith.addf %193, %194 : vector<8x16xf32>
    %196 = arith.addf %195, %137 : vector<8x16xf32>
    %cst_84 = arith.constant 0.000000e+00 : f32
    %197 = vector.broadcast %cst_84 : f32 to vector<8x16xf32>
    %198 = arith.maximumf %196, %197 : vector<8x16xf32>
    %199 = arith.truncf %198 : vector<8x16xf32> to vector<8x16xbf16>
    %c48 = arith.constant 48 : index
    %c0_85 = arith.constant 0 : index
    %200 = vector.load %arg4[%c48, %c0_85] : memref<64x16xbf16, #tpu.memory_space<vmem>>, vector<16x16xbf16>
    %cst_86 = arith.constant dense<0.000000e+00> : vector<8x16xf32>
    %201 = tpu.matmul %199, %200, %cst_86 {dimension_numbers = #tpu.dot_dimension_numbers<[1], [0], [0], [1], [0, 0, 1, 1], [], []>} : vector<8x16xbf16>, vector<16x16xbf16>, vector<8x16xf32> -> vector<8x16xf32>
    %c6_87 = arith.constant 6 : index
    %c0_88 = arith.constant 0 : index
    %202 = vector.load %arg6[%c6_87, %c0_88] : memref<7x16xf32, #tpu.memory_space<vmem>>, vector<1x16xf32>
    %203 = vector.broadcast %202 : vector<1x16xf32> to vector<8x16xf32>
    %204 = arith.addf %201, %203 : vector<8x16xf32>
    %205 = vector.extract_strided_slice %204 {offsets = [0, 0], sizes = [8, 8], strides = [1, 1]} : vector<8x16xf32> to vector<8x8xf32>
    %206 = vector.extract_strided_slice %204 {offsets = [0, 8], sizes = [8, 8], strides = [1, 1]} : vector<8x16xf32> to vector<8x8xf32>
    %207 = math.exp %206 : vector<8x8xf32>
    %c0_89 = arith.constant 0 : index
    %c0_90 = arith.constant 0 : index
    %208 = vector.load %arg2[%c0_89, %c0_90] : memref<8x8xf32, #tpu.memory_space<vmem>>, vector<8x8xf32>
    %209 = arith.mulf %207, %208 : vector<8x8xf32>
    %210 = arith.addf %205, %209 : vector<8x8xf32>
    %c0_91 = arith.constant 0 : index
    %c0_92 = arith.constant 0 : index
    %211 = vector.load %arg7[%c0_91, %c0_92] : memref<8x8xf32, #tpu.memory_space<vmem>>, vector<8x8xf32>
    tpu.vector_store %arg7[%c0_91, %c0_92], %210 {strides = array<i32>} : memref<8x8xf32, #tpu.memory_space<vmem>>, vector<8x8xf32>,
    %212 = arith.mulf %207, %207 : vector<8x8xf32>
    %213 = arith.mulf %205, %205 : vector<8x8xf32>
    %214 = arith.addf %212, %213 : vector<8x8xf32>
    %215 = arith.subf %214, %206 : vector<8x8xf32>
    %cst_93 = arith.constant 5.000000e-01 : f32
    %216 = vector.broadcast %cst_93 : f32 to vector<8x8xf32>
    %217 = arith.subf %215, %216 : vector<8x8xf32>
    %218 = vector.shape_cast %217 : vector<8x8xf32> to vector<1x8x8xf32>
    %cst_94 = arith.constant dense<0.000000e+00> : vector<1xf32>
    %219 = vector.multi_reduction <add>, %218, %cst_94 [1, 2] : vector<1x8x8xf32> to vector<1xf32>
    %220 = vector.shape_cast %219 : vector<1xf32> to vector<1x1x1xf32>
    %221 = vector.extract %220[0, 0, 0] : f32 from vector<1x1x1xf32>
    %222 = vector.broadcast %221 : f32 to vector<1x1xf32>
    %c0_95 = arith.constant 0 : index
    %c0_96 = arith.constant 0 : index
    %223 = vector.load %arg8[%c0_95, %c0_96] : memref<1x1xf32, #tpu.memory_space<vmem>>, vector<1x1xf32>
    tpu.vector_store %arg8[%c0_95, %c0_96], %222 {strides = array<i32>} : memref<1x1xf32, #tpu.memory_space<vmem>>, vector<1x1xf32>,
    return
  }
}

</mosaic_0001>

<llo_original>
// kernel: tpu_custom_call.1
$region0: #{tpu_custom_call.1}
  #allocation0 [shape = 'u32[]', space=smem, size = 0x4, offset = 0x4, fixed_abs, tag = 'smem constant byte address 0x4 - core index']
  #allocation1 [shape = 'u32[144,128]{1,0:T(1,128)}', space=vmem, size = 0x12000, scoped, tag = 'internal scratch']
  %s0 = inlined_call_operand.vmem [shape: f32[8,16], index: 0, kind: input, shape index: {}]
  %s1 = inlined_call_operand.vmem [shape: f32[8,4], index: 1, kind: input, shape index: {}]
  %s2 = inlined_call_operand.vmem [shape: f32[8,8], index: 2, kind: input, shape index: {}]
  %s3 = inlined_call_operand.vmem [shape: bf16[128,32], index: 3, kind: input, shape index: {}]
  %s4 = inlined_call_operand.vmem [shape: bf16[64,16], index: 4, kind: input, shape index: {}]
  %s5 = inlined_call_operand.vmem [shape: f32[7,32], index: 5, kind: input, shape index: {}]
  %s6 = inlined_call_operand.vmem [shape: f32[7,16], index: 6, kind: input, shape index: {}]
  %s7 = inlined_call_operand.hbm [shape: f32[8,8], index: 7, kind: output, shape index: {0}]
  %s8 = inlined_call_operand.hbm [shape: f32[1,1], index: 8, kind: output, shape index: {1}]
  %9 = xla_tuple %s7, %s8
  %s10 = sld [smem:[#allocation0]]
  $region46: #{tpu_custom_call.1} parent=0
    _
  %s12 = ssub.s32 1, %s10
  %s13 = scalar_select 0, %s12, %s10
  $region1: #{tpu_custom_call.1} parent=0
    #allocation2 [shape = 'u8[4096]{0}', space=vmem, size = 0x1000, scoped, tag = 'output window, operand 0, single buffered']
    #allocation3 [shape = 's32[1]{0}', space=sflag, size = 0x4, scoped, tag = 'scoped memory for tpu_custom_call.1']
    #allocation4 [shape = 'u8[512]{0}', space=vmem, size = 0x400, scoped, tag = 'output window, operand 1, single buffered']
    #allocation5 [shape = 's32[1]{0}', space=sflag, size = 0x4, scoped, tag = 'scoped memory for tpu_custom_call.1']
    %14 = vsyncpa [#allocation3], 0
    %15 = vsyncpa [#allocation5], 0
    // Predicated region
    $region2: #{tpu_custom_call.1} parent=1 // pred_check
      _
    $region3: #{tpu_custom_call.1} parent=1 // pred_check_branch
      %17 = sbr.rel (0) target = $region5
    $region4: #{tpu_custom_call.1} parent=1 // pred_region
      _
    $region5: #{tpu_custom_call.1} parent=1 // pred_fallthru
      _
    // Predicated region
    $region6: #{tpu_custom_call.1} parent=1 // pred_check
      _
    $region7: #{tpu_custom_call.1} parent=1 // pred_check_branch
      %19 = sbr.rel (0) target = $region9
    $region8: #{tpu_custom_call.1} parent=1 // pred_region
      _
    $region9: #{tpu_custom_call.1} parent=1 // pred_fallthru
      _
    // Predicated region
    $region10: #{tpu_custom_call.1} parent=1 // pred_check
      _
    $region11: #{tpu_custom_call.1} parent=1 // pred_check_branch
      %21 = sbr.rel (0) target = $region13
    $region12: #{tpu_custom_call.1} parent=1 // pred_region
      _
    $region13: #{tpu_custom_call.1} parent=1 // pred_fallthru
      _
    // Predicated region
    $region14: #{tpu_custom_call.1} parent=1 // pred_check
      _
    $region15: #{tpu_custom_call.1} parent=1 // pred_check_branch
      %23 = sbr.rel (0) target = $region17
    $region16: #{tpu_custom_call.1} parent=1 // pred_region
      _
    $region17: #{tpu_custom_call.1} parent=1 // pred_fallthru
      _
    // Predicated region
    $region18: #{tpu_custom_call.1} parent=1 // pred_check
      _
    $region19: #{tpu_custom_call.1} parent=1 // pred_check_branch
      %25 = sbr.rel (0) target = $region21
    $region20: #{tpu_custom_call.1} parent=1 // pred_region
      _
    $region21: #{tpu_custom_call.1} parent=1 // pred_fallthru
      _
    // Predicated region
    $region22: #{tpu_custom_call.1} parent=1 // pred_check
      _
    $region23: #{tpu_custom_call.1} parent=1 // pred_check_branch
      %27 = sbr.rel (0) target = $region25
    $region24: #{tpu_custom_call.1} parent=1 // pred_region
      _
    $region25: #{tpu_custom_call.1} parent=1 // pred_fallthru
      _
    // Predicated region
    $region26: #{tpu_custom_call.1} parent=1 // pred_check
      _
    $region27: #{tpu_custom_call.1} parent=1 // pred_check_branch
      %29 = sbr.rel (0) target = $region29
    $region28: #{tpu_custom_call.1} parent=1 // pred_region
      _
    $region29: #{tpu_custom_call.1} parent=1 // pred_fallthru
      _
    %v31 = vld [vmem:[%s0] sm:$0xff]
    %v32 = vld [vmem:[%s1] sm:$0xff]
    %v33 = vpack.c.bf16 %v31, %v31
    %v34 = vld [vmem:[%s3] sm:$0xf]
    %v35 = vld [vmem:[%s3 + $0x4] sm:$0xf]
    %v36 = vpack.c.bf16 %v32, %v32
    %v37 = vld [vmem:[%s3 + $0x8] sm:$0x3]
    %vm38 = vcmask 31744
    %v40 = vsel %vm38, %v36, 0
    %vm42 = vcmask 1041408
    %v44 = vsel %vm42, %v37, 0
    %46 = vmatprep.subr.bf16.mxu0 0
    %47 = vmatpush1.bf16.msra.mxu0 %v44
    %48 = vmatprep.subr.bf16.mxu0 0
    %49 = vmatpush1.bf16.msra.mxu0 0
    %50 = vmatprep.subr.bf16.mxu0 0
    %51 = vmatpush1.bf16.msra.mxu0 0
    %52 = vmatprep.subr.bf16.mxu0 0
    %53 = vmatpush1.bf16.msra.mxu0 0
    %54 = vmatprep.subr.bf16.mxu0 0
    %55 = vmatpush1.bf16.msra.mxu0 0
    %56 = vmatprep.subr.bf16.mxu0 0
    %57 = vmatpush1.bf16.msra.mxu0 0
    %58 = vmatprep.subr.bf16.mxu0 0
    %59 = vmatpush1.bf16.msra.mxu0 0
    %60 = vmatprep.subr.bf16.mxu0 0
    %61 = vmatpush1.bf16.msra.mxu0 0
    %62 = vmatprep.subr.bf16.mxu0 0
    %63 = vmatpush1.bf16.msra.mxu0 0
    %64 = vmatprep.subr.bf16.mxu0 0
    %65 = vmatpush1.bf16.msra.mxu0 0
    %66 = vmatprep.subr.bf16.mxu0 0
    %67 = vmatpush1.bf16.msra.mxu0 0
    %68 = vmatprep.subr.bf16.mxu0 0
    %69 = vmatpush1.bf16.msra.mxu0 0
    %70 = vmatprep.subr.bf16.mxu0 0
    %71 = vmatpush1.bf16.msra.mxu0 0
    %72 = vmatprep.subr.bf16.mxu0 0
    %73 = vmatpush1.bf16.msra.mxu0 0
    %74 = vmatprep.subr.bf16.mxu0 0
    %75 = vmatpush1.bf16.msra.mxu0 0
    %76 = vmatprep.subr.bf16.mxu0 0
    %77 = vmatpush1.bf16.msra.mxu0 0
    %78 = vmatprep.mubr.bf16.mxu0 0
    %79 = vmatmul.mubr.bf16.gmra.mrb[0].mxu0 %v40
    %v80 = vpop.f32.mrb[0].mxu0
    %v81 = vadd.f32 0.0, %v80
    %v82 = vpop.f32.mrb[0].mxu0
    %v83 = vpop.f32.mrb[0].mxu0
    %v84 = vpop.f32.mrb[0].mxu0
    %85 = vdwg.mxu0
    %v88 = vunpack.c.l.b16 %v34
    %v89 = vunpack.c.l.b16 %v35
    %v90 = vpack.c.b16 %v89, %v88
    %vm92 = vcmask 130048
    %v94 = vsel %vm92, %v33, 0
    %96 = vmatprep.subr.bf16.mxu0 0
    %97 = vmatpush1.bf16.msra.mxu0 %v90
    %98 = vmatprep.subr.bf16.mxu0 0
    %99 = vmatpush1.bf16.msra.mxu0 0
    %100 = vmatprep.subr.bf16.mxu0 0
    %101 = vmatpush1.bf16.msra.mxu0 0
    %102 = vmatprep.subr.bf16.mxu0 0
    %103 = vmatpush1.bf16.msra.mxu0 0
    %104 = vmatprep.subr.bf16.mxu0 0
    %105 = vmatpush1.bf16.msra.mxu0 0
    %106 = vmatprep.subr.bf16.mxu0 0
    %107 = vmatpush1.bf16.msra.mxu0 0
    %108 = vmatprep.subr.bf16.mxu0 0
    %109 = vmatpush1.bf16.msra.mxu0 0
    %110 = vmatprep.subr.bf16.mxu0 0
    %111 = vmatpush1.bf16.msra.mxu0 0
    %112 = vmatprep.subr.bf16.mxu0 0
    %113 = vmatpush1.bf16.msra.mxu0 0
    %114 = vmatprep.subr.bf16.mxu0 0
    %115 = vmatpush1.bf16.msra.mxu0 0
    %116 = vmatprep.subr.bf16.mxu0 0
    %117 = vmatpush1.bf16.msra.mxu0 0
    %118 = vmatprep.subr.bf16.mxu0 0
    %119 = vmatpush1.bf16.msra.mxu0 0
    %120 = vmatprep.subr.bf16.mxu0 0
    %121 = vmatpush1.bf16.msra.mxu0 0
    %122 = vmatprep.subr.bf16.mxu0 0
    %123 = vmatpush1.bf16.msra.mxu0 0
    %124 = vmatprep.subr.bf16.mxu0 0
    %125 = vmatpush1.bf16.msra.mxu0 0
    %126 = vmatprep.subr.bf16.mxu0 0
    %127 = vmatpush1.bf16.msra.mxu0 0
    %128 = vmatprep.mubr.bf16.mxu0 0
    %129 = vmatmul.mubr.bf16.gmra.mrb[0].mxu0 %v94
    %v130 = vpop.f32.mrb[0].mxu0
    %v131 = vadd.f32 %v81, %v130
    %v132 = vpop.f32.mrb[0].mxu0
    %v133 = vpop.f32.mrb[0].mxu0
    %v134 = vpop.f32.mrb[0].mxu0
    %135 = vdwg.mxu0
    %v136 = vld [vmem:[%s5] sm:$0x1]
    %v137 = vlaneseq
    %v138 = vshrl.u32 %v137, 7
    %v139 = vsub.s32 0, %v138
    %v140 = vrot.slane %v136, %v139
    %v141 = vadd.f32 %v131, %v140
    %v142 = vmax.f32 %v141, 0.0
    %v143 = vpack.c.bf16 %v142, %v142
    %v144 = vld [vmem:[%s3 + $0x10] sm:$0xf]
    %v145 = vld [vmem:[%s3 + $0x14] sm:$0xf]
    %v146 = vld [vmem:[%s3 + $0x18] sm:$0xf]
    %v147 = vld [vmem:[%s3 + $0x1c] sm:$0xf]
    %v152 = vunpack.c.l.b16 %v144
    %v153 = vunpack.c.l.b16 %v145
    %v154 = vunpack.c.l.b16 %v146
    %v155 = vunpack.c.l.b16 %v147
    %v156 = vpack.c.b16 %v153, %v152
    %v157 = vpack.c.b16 %v155, %v154
    %vm160 = vcmask 261120
    %v162 = vsel %vm160, %v143, 0
    %164 = vmatprep.subr.bf16.mxu0 0
    %165 = vmatpush1.bf16.msra.mxu0 %v156
    %166 = vmatprep.subr.bf16.mxu0 0
    %167 = vmatpush1.bf16.msra.mxu0 %v157
    %168 = vmatprep.subr.bf16.mxu0 0
    %169 = vmatpush1.bf16.msra.mxu0 0
    %170 = vmatprep.subr.bf16.mxu0 0
    %171 = vmatpush1.bf16.msra.mxu0 0
    %172 = vmatprep.subr.bf16.mxu0 0
    %173 = vmatpush1.bf16.msra.mxu0 0
    %174 = vmatprep.subr.bf16.mxu0 0
    %175 = vmatpush1.bf16.msra.mxu0 0
    %176 = vmatprep.subr.bf16.mxu0 0
    %177 = vmatpush1.bf16.msra.mxu0 0
    %178 = vmatprep.subr.bf16.mxu0 0
    %179 = vmatpush1.bf16.msra.mxu0 0
    %180 = vmatprep.subr.bf16.mxu0 0
    %181 = vmatpush1.bf16.msra.mxu0 0
    %182 = vmatprep.subr.bf16.mxu0 0
    %183 = vmatpush1.bf16.msra.mxu0 0
    %184 = vmatprep.subr.bf16.mxu0 0
    %185 = vmatpush1.bf16.msra.mxu0 0
    %186 = vmatprep.subr.bf16.mxu0 0
    %187 = vmatpush1.bf16.msra.mxu0 0
    %188 = vmatprep.subr.bf16.mxu0 0
    %189 = vmatpush1.bf16.msra.mxu0 0
    %190 = vmatprep.subr.bf16.mxu0 0
    %191 = vmatpush1.bf16.msra.mxu0 0
    %192 = vmatprep.subr.bf16.mxu0 0
    %193 = vmatpush1.bf16.msra.mxu0 0
    %194 = vmatprep.subr.bf16.mxu0 0
    %195 = vmatpush1.bf16.msra.mxu0 0
    %196 = vmatprep.mubr.bf16.mxu0 0
    %197 = vmatmul.mubr.bf16.gmra.mrb[0].mxu0 %v162
    %v198 = vpop.f32.mrb[0].mxu0
    %v199 = vadd.f32 0.0, %v198
    %v200 = vpop.f32.mrb[0].mxu0
    %v201 = vpop.f32.mrb[0].mxu0
    %v202 = vpop.f32.mrb[0].mxu0
    %203 = vdwg.mxu0
    %v204 = vld [vmem:[%s5 + $0x1] sm:$0x1]
    %v205 = vld [vmem:[%s5 + $0x2] sm:$0x1]
    %v206 = vsel %vm160, %v199, 0.0
    %v207 = vrot.slane %v206, 4
    %v208 = vadd.f32 %v206, %v207
    %v209 = vrot.slane %v208, 2
    %v210 = vadd.f32 %v208, %v209
    %v211 = vrot.slane %v210, 1
    %v212 = vadd.f32 %v210, %v211
    %v213 = vrcp.pop 8.0
    %v214 = vmul.f32 %v212, %v213
    %v215 = vmul.f32 %v199, %v199
    %v216 = vsel %vm160, %v215, 0.0
    %v217 = vrot.slane %v216, 4
    %v218 = vadd.f32 %v216, %v217
    %v219 = vrot.slane %v218, 2
    %v220 = vadd.f32 %v218, %v219
    %v221 = vrot.slane %v220, 1
    %v222 = vadd.f32 %v220, %v221
    %v223 = vmul.f32 %v222, %v213
    %v224 = vmul.f32 %v214, %v214
    %v225 = vsub.f32 %v223, %v224
    %v226 = vmax.f32 %v225, 0.0
    %v227 = vadd.f32 %v226, 1e-05
    %v228 = vrsqrt.pop %v227
    %v229 = vmul.f32 %v204, %v228
    %v230 = vmul.f32 %v214, %v229
    %v231 = vsub.f32 %v205, %v230
    %v232 = vlaneseq
    %v233 = vshrl.u32 %v232, 7
    %v234 = vsub.s32 0, %v233
    %v235 = vrot.slane %v229, %v234
    %v236 = vmul.f32 %v199, %v235
    %v237 = vlaneseq
    %v238 = vshrl.u32 %v237, 7
    %v239 = vsub.s32 0, %v238
    %v240 = vrot.slane %v231, %v239
    %v241 = vadd.f32 %v236, %v240
    %v242 = vmax.f32 %v241, 0.0
    %v243 = vpack.c.bf16 %v242, %v242
    %v244 = vld [vmem:[%s3 + $0x20] sm:$0xf]
    %v245 = vld [vmem:[%s3 + $0x24] sm:$0xf]
    %v246 = vld [vmem:[%s3 + $0x28] sm:$0xf]
    %v247 = vld [vmem:[%s3 + $0x2c] sm:$0xf]
    %v252 = vunpack.c.l.b16 %v244
    %v253 = vunpack.c.l.b16 %v245
    %v254 = vunpack.c.l.b16 %v246
    %v255 = vunpack.c.l.b16 %v247
    %v256 = vpack.c.b16 %v253, %v252
    %v257 = vpack.c.b16 %v255, %v254
    %v261 = vsel %vm160, %v243, 0
    %263 = vmatprep.subr.bf16.mxu0 0
    %264 = vmatpush1.bf16.msra.mxu0 %v256
    %265 = vmatprep.subr.bf16.mxu0 0
    %266 = vmatpush1.bf16.msra.mxu0 %v257
    %267 = vmatprep.subr.bf16.mxu0 0
    %268 = vmatpush1.bf16.msra.mxu0 0
    %269 = vmatprep.subr.bf16.mxu0 0
    %270 = vmatpush1.bf16.msra.mxu0 0
    %271 = vmatprep.subr.bf16.mxu0 0
    %272 = vmatpush1.bf16.msra.mxu0 0
    %273 = vmatprep.subr.bf16.mxu0 0
    %274 = vmatpush1.bf16.msra.mxu0 0
    %275 = vmatprep.subr.bf16.mxu0 0
    %276 = vmatpush1.bf16.msra.mxu0 0
    %277 = vmatprep.subr.bf16.mxu0 0
    %278 = vmatpush1.bf16.msra.mxu0 0
    %279 = vmatprep.subr.bf16.mxu0 0
    %280 = vmatpush1.bf16.msra.mxu0 0
    %281 = vmatprep.subr.bf16.mxu0 0
    %282 = vmatpush1.bf16.msra.mxu0 0
    %283 = vmatprep.subr.bf16.mxu0 0
    %284 = vmatpush1.bf16.msra.mxu0 0
    %285 = vmatprep.subr.bf16.mxu0 0
    %286 = vmatpush1.bf16.msra.mxu0 0
    %287 = vmatprep.subr.bf16.mxu0 0
    %288 = vmatpush1.bf16.msra.mxu0 0
    %289 = vmatprep.subr.bf16.mxu0 0
    %290 = vmatpush1.bf16.msra.mxu0 0
    %291 = vmatprep.subr.bf16.mxu0 0
    %292 = vmatpush1.bf16.msra.mxu0 0
    %293 = vmatprep.subr.bf16.mxu0 0
    %294 = vmatpush1.bf16.msra.mxu0 0
    %295 = vmatprep.mubr.bf16.mxu0 0
    %296 = vmatmul.mubr.bf16.gmra.mrb[0].mxu0 %v261
    %v297 = vpop.f32.mrb[0].mxu0
    %v298 = vadd.f32 0.0, %v297
    %v299 = vpop.f32.mrb[0].mxu0
    %v300 = vpop.f32.mrb[0].mxu0
    %v301 = vpop.f32.mrb[0].mxu0
    %302 = vdwg.mxu0
    %v303 = vld [vmem:[%s5 + $0x3] sm:$0x1]
    %v304 = vld [vmem:[%s5 + $0x4] sm:$0x1]
    %v305 = vsel %vm160, %v298, 0.0
    %v306 = vrot.slane %v305, 4
    %v307 = vadd.f32 %v305, %v306
    %v308 = vrot.slane %v307, 2
    %v309 = vadd.f32 %v307, %v308
    %v310 = vrot.slane %v309, 1
    %v311 = vadd.f32 %v309, %v310
    %v312 = vmul.f32 %v311, %v213
    %v313 = vmul.f32 %v298, %v298
    %v314 = vsel %vm160, %v313, 0.0
    %v315 = vrot.slane %v314, 4
    %v316 = vadd.f32 %v314, %v315
    %v317 = vrot.slane %v316, 2
    %v318 = vadd.f32 %v316, %v317
    %v319 = vrot.slane %v318, 1
    %v320 = vadd.f32 %v318, %v319
    %v321 = vmul.f32 %v320, %v213
    %v322 = vmul.f32 %v312, %v312
    %v323 = vsub.f32 %v321, %v322
    %v324 = vmax.f32 %v323, 0.0
    %v325 = vadd.f32 %v324, 1e-05
    %v326 = vrsqrt.pop %v325
    %v327 = vmul.f32 %v303, %v326
    %v328 = vmul.f32 %v312, %v327
    %v329 = vsub.f32 %v304, %v328
    %v330 = vlaneseq
    %v331 = vshrl.u32 %v330, 7
    %v332 = vsub.s32 0, %v331
    %v333 = vrot.slane %v327, %v332
    %v334 = vmul.f32 %v298, %v333
    %v335 = vlaneseq
    %v336 = vshrl.u32 %v335, 7
    %v337 = vsub.s32 0, %v336
    %v338 = vrot.slane %v329, %v337
    %v339 = vadd.f32 %v334, %v338
    %v340 = vadd.f32 %v339, %v142
    %v341 = vmax.f32 %v340, 0.0
    %v342 = vpack.c.bf16 %v341, %v341
    %v343 = vld [vmem:[%s3 + $0x30] sm:$0xf]
    %v344 = vld [vmem:[%s3 + $0x34] sm:$0xf]
    %v345 = vld [vmem:[%s3 + $0x38] sm:$0xf]
    %v346 = vld [vmem:[%s3 + $0x3c] sm:$0xf]
    %v351 = vunpack.c.l.b16 %v343
    %v352 = vunpack.c.l.b16 %v344
    %v353 = vunpack.c.l.b16 %v345
    %v354 = vunpack.c.l.b16 %v346
    %v355 = vpack.c.b16 %v352, %v351
    %v356 = vpack.c.b16 %v354, %v353
    %v360 = vsel %vm160, %v342, 0
    %362 = vmatprep.subr.bf16.mxu0 0
    %363 = vmatpush1.bf16.msra.mxu0 %v355
    %364 = vmatprep.subr.bf16.mxu0 0
    %365 = vmatpush1.bf16.msra.mxu0 %v356
    %366 = vmatprep.subr.bf16.mxu0 0
    %367 = vmatpush1.bf16.msra.mxu0 0
    %368 = vmatprep.subr.bf16.mxu0 0
    %369 = vmatpush1.bf16.msra.mxu0 0
    %370 = vmatprep.subr.bf16.mxu0 0
    %371 = vmatpush1.bf16.msra.mxu0 0
    %372 = vmatprep.subr.bf16.mxu0 0
    %373 = vmatpush1.bf16.msra.mxu0 0
    %374 = vmatprep.subr.bf16.mxu0 0
    %375 = vmatpush1.bf16.msra.mxu0 0
    %376 = vmatprep.subr.bf16.mxu0 0
    %377 = vmatpush1.bf16.msra.mxu0 0
    %378 = vmatprep.subr.bf16.mxu0 0
    %379 = vmatpush1.bf16.msra.mxu0 0
    %380 = vmatprep.subr.bf16.mxu0 0
    %381 = vmatpush1.bf16.msra.mxu0 0
    %382 = vmatprep.subr.bf16.mxu0 0
    %383 = vmatpush1.bf16.msra.mxu0 0
    %384 = vmatprep.subr.bf16.mxu0 0
    %385 = vmatpush1.bf16.msra.mxu0 0
    %386 = vmatprep.subr.bf16.mxu0 0
    %387 = vmatpush1.bf16.msra.mxu0 0
    %388 = vmatprep.subr.bf16.mxu0 0
    %389 = vmatpush1.bf16.msra.mxu0 0
    %390 = vmatprep.subr.bf16.mxu0 0
    %391 = vmatpush1.bf16.msra.mxu0 0
    %392 = vmatprep.subr.bf16.mxu0 0
    %393 = vmatpush1.bf16.msra.mxu0 0
    %394 = vmatprep.mubr.bf16.mxu0 0
    %395 = vmatmul.mubr.bf16.gmra.mrb[0].mxu0 %v360
    %v396 = vpop.f32.mrb[0].mxu0
    %v397 = vadd.f32 0.0, %v396
    %v398 = vpop.f32.mrb[0].mxu0
    %v399 = vpop.f32.mrb[0].mxu0
    %v400 = vpop.f32.mrb[0].mxu0
    %401 = vdwg.mxu0
    %v402 = vld [vmem:[%s5 + $0x5] sm:$0x1]
    %v403 = vld [vmem:[%s5 + $0x6] sm:$0x1]
    %v404 = vsel %vm160, %v397, 0.0
    %v405 = vrot.slane %v404, 4
    %v406 = vadd.f32 %v404, %v405
    %v407 = vrot.slane %v406, 2
    %v408 = vadd.f32 %v406, %v407
    %v409 = vrot.slane %v408, 1
    %v410 = vadd.f32 %v408, %v409
    %v411 = vmul.f32 %v410, %v213
    %v412 = vmul.f32 %v397, %v397
    %v413 = vsel %vm160, %v412, 0.0
    %v414 = vrot.slane %v413, 4
    %v415 = vadd.f32 %v413, %v414
    %v416 = vrot.slane %v415, 2
    %v417 = vadd.f32 %v415, %v416
    %v418 = vrot.slane %v417, 1
    %v419 = vadd.f32 %v417, %v418
    %v420 = vmul.f32 %v419, %v213
    %v421 = vmul.f32 %v411, %v411
    %v422 = vsub.f32 %v420, %v421
    %v423 = vmax.f32 %v422, 0.0
    %v424 = vadd.f32 %v423, 1e-05
    %v425 = vrsqrt.pop %v424
    %v426 = vmul.f32 %v402, %v425
    %v427 = vmul.f32 %v411, %v426
    %v428 = vsub.f32 %v403, %v427
    %v429 = vlaneseq
    %v430 = vshrl.u32 %v429, 7
    %v431 = vsub.s32 0, %v430
    %v432 = vrot.slane %v426, %v431
    %v433 = vmul.f32 %v397, %v432
    %v434 = vlaneseq
    %v435 = vshrl.u32 %v434, 7
    %v436 = vsub.s32 0, %v435
    %v437 = vrot.slane %v428, %v436
    %v438 = vadd.f32 %v433, %v437
    %v439 = vmax.f32 %v438, 0.0
    %v440 = vpack.c.bf16 %v439, %v439
    %v441 = vld [vmem:[%s4] sm:$0xf]
    %v442 = vld [vmem:[%s4 + $0x4] sm:$0xf]
    %v445 = vunpack.c.l.b16 %v441
    %v446 = vunpack.c.l.b16 %v442
    %v447 = vpack.c.b16 %v446, %v445
    %v450 = vsel %vm92, %v440, 0
    %452 = vmatprep.subr.bf16.mxu0 0
    %453 = vmatpush1.bf16.msra.mxu0 %v447
    %454 = vmatprep.subr.bf16.mxu0 0
    %455 = vmatpush1.bf16.msra.mxu0 0
    %456 = vmatprep.subr.bf16.mxu0 0
    %457 = vmatpush1.bf16.msra.mxu0 0
    %458 = vmatprep.subr.bf16.mxu0 0
    %459 = vmatpush1.bf16.msra.mxu0 0
    %460 = vmatprep.subr.bf16.mxu0 0
    %461 = vmatpush1.bf16.msra.mxu0 0
    %462 = vmatprep.subr.bf16.mxu0 0
    %463 = vmatpush1.bf16.msra.mxu0 0
    %464 = vmatprep.subr.bf16.mxu0 0
    %465 = vmatpush1.bf16.msra.mxu0 0
    %466 = vmatprep.subr.bf16.mxu0 0
    %467 = vmatpush1.bf16.msra.mxu0 0
    %468 = vmatprep.subr.bf16.mxu0 0
    %469 = vmatpush1.bf16.msra.mxu0 0
    %470 = vmatprep.subr.bf16.mxu0 0
    %471 = vmatpush1.bf16.msra.mxu0 0
    %472 = vmatprep.subr.bf16.mxu0 0
    %473 = vmatpush1.bf16.msra.mxu0 0
    %474 = vmatprep.subr.bf16.mxu0 0
    %475 = vmatpush1.bf16.msra.mxu0 0
    %476 = vmatprep.subr.bf16.mxu0 0
    %477 = vmatpush1.bf16.msra.mxu0 0
    %478 = vmatprep.subr.bf16.mxu0 0
    %479 = vmatpush1.bf16.msra.mxu0 0
    %480 = vmatprep.subr.bf16.mxu0 0
    %481 = vmatpush1.bf16.msra.mxu0 0
    %482 = vmatprep.subr.bf16.mxu0 0
    %483 = vmatpush1.bf16.msra.mxu0 0
    %484 = vmatprep.mubr.bf16.mxu0 0
    %485 = vmatmul.mubr.bf16.gmra.mrb[0].mxu0 %v450
    %v486 = vpop.f32.mrb[0].mxu0
    %v487 = vadd.f32 0.0, %v486
    %v488 = vpop.f32.mrb[0].mxu0
    %v489 = vpop.f32.mrb[0].mxu0
    %v490 = vpop.f32.mrb[0].mxu0
    %491 = vdwg.mxu0
    %v492 = vld [vmem:[%s6] sm:$0x1]
    %v493 = vld [vmem:[%s6 + $0x1] sm:$0x1]
    %v494 = vsel %vm92, %v487, 0.0
    %v495 = vrot.slane %v494, 4
    %v496 = vadd.f32 %v494, %v495
    %v497 = vrot.slane %v496, 2
    %v498 = vadd.f32 %v496, %v497
    %v499 = vrot.slane %v498, 1
    %v500 = vadd.f32 %v498, %v499
    %v501 = vmul.f32 %v500, %v213
    %v502 = vmul.f32 %v487, %v487
    %v503 = vsel %vm92, %v502, 0.0
    %v504 = vrot.slane %v503, 4
    %v505 = vadd.f32 %v503, %v504
    %v506 = vrot.slane %v505, 2
    %v507 = vadd.f32 %v505, %v506
    %v508 = vrot.slane %v507, 1
    %v509 = vadd.f32 %v507, %v508
    %v510 = vmul.f32 %v509, %v213
    %v511 = vmul.f32 %v501, %v501
    %v512 = vsub.f32 %v510, %v511
    %v513 = vmax.f32 %v512, 0.0
    %v514 = vadd.f32 %v513, 1e-05
    %v515 = vrsqrt.pop %v514
    %v516 = vmul.f32 %v492, %v515
    %v517 = vmul.f32 %v501, %v516
    %v518 = vsub.f32 %v493, %v517
    %v519 = vlaneseq
    %v520 = vshrl.u32 %v519, 7
    %v521 = vsub.s32 0, %v520
    %v522 = vrot.slane %v516, %v521
    %v523 = vmul.f32 %v487, %v522
    %v524 = vlaneseq
    %v525 = vshrl.u32 %v524, 7
    %v526 = vsub.s32 0, %v525
    %v527 = vrot.slane %v518, %v526
    %v528 = vadd.f32 %v523, %v527
    %530 = vrot.lane.b32.xlu0 %v438, 112
    %v531 = vpop.permute.xlu0 %530
    %v533 = vadd.f32 %v528, %v531
    %v534 = vmax.f32 %v533, 0.0
    %v535 = vpack.c.bf16 %v534, %v534
    %v536 = vld [vmem:[%s4 + $0x8] sm:$0xf]
    %v537 = vld [vmem:[%s4 + $0xc] sm:$0xf]
    %v540 = vunpack.c.l.b16 %v536
    %v541 = vunpack.c.l.b16 %v537
    %v542 = vpack.c.b16 %v541, %v540
    %v545 = vsel %vm92, %v535, 0
    %547 = vmatprep.subr.bf16.mxu0 0
    %548 = vmatpush1.bf16.msra.mxu0 %v542
    %549 = vmatprep.subr.bf16.mxu0 0
    %550 = vmatpush1.bf16.msra.mxu0 0
    %551 = vmatprep.subr.bf16.mxu0 0
    %552 = vmatpush1.bf16.msra.mxu0 0
    %553 = vmatprep.subr.bf16.mxu0 0
    %554 = vmatpush1.bf16.msra.mxu0 0
    %555 = vmatprep.subr.bf16.mxu0 0
    %556 = vmatpush1.bf16.msra.mxu0 0
    %557 = vmatprep.subr.bf16.mxu0 0
    %558 = vmatpush1.bf16.msra.mxu0 0
    %559 = vmatprep.subr.bf16.mxu0 0
    %560 = vmatpush1.bf16.msra.mxu0 0
    %561 = vmatprep.subr.bf16.mxu0 0
    %562 = vmatpush1.bf16.msra.mxu0 0
    %563 = vmatprep.subr.bf16.mxu0 0
    %564 = vmatpush1.bf16.msra.mxu0 0
    %565 = vmatprep.subr.bf16.mxu0 0
    %566 = vmatpush1.bf16.msra.mxu0 0
    %567 = vmatprep.subr.bf16.mxu0 0
    %568 = vmatpush1.bf16.msra.mxu0 0
    %569 = vmatprep.subr.bf16.mxu0 0
    %570 = vmatpush1.bf16.msra.mxu0 0
    %571 = vmatprep.subr.bf16.mxu0 0
    %572 = vmatpush1.bf16.msra.mxu0 0
    %573 = vmatprep.subr.bf16.mxu0 0
    %574 = vmatpush1.bf16.msra.mxu0 0
    %575 = vmatprep.subr.bf16.mxu0 0
    %576 = vmatpush1.bf16.msra.mxu0 0
    %577 = vmatprep.subr.bf16.mxu0 0
    %578 = vmatpush1.bf16.msra.mxu0 0
    %579 = vmatprep.mubr.bf16.mxu0 0
    %580 = vmatmul.mubr.bf16.gmra.mrb[0].mxu0 %v545
    %v581 = vpop.f32.mrb[0].mxu0
    %v582 = vadd.f32 0.0, %v581
    %v583 = vpop.f32.mrb[0].mxu0
    %v584 = vpop.f32.mrb[0].mxu0
    %v585 = vpop.f32.mrb[0].mxu0
    %586 = vdwg.mxu0
    %v587 = vld [vmem:[%s6 + $0x2] sm:$0x1]
    %v588 = vld [vmem:[%s6 + $0x3] sm:$0x1]
    %v589 = vsel %vm92, %v582, 0.0
    %v590 = vrot.slane %v589, 4
    %v591 = vadd.f32 %v589, %v590
    %v592 = vrot.slane %v591, 2
    %v593 = vadd.f32 %v591, %v592
    %v594 = vrot.slane %v593, 1
    %v595 = vadd.f32 %v593, %v594
    %v596 = vmul.f32 %v595, %v213
    %v597 = vmul.f32 %v582, %v582
    %v598 = vsel %vm92, %v597, 0.0
    %v599 = vrot.slane %v598, 4
    %v600 = vadd.f32 %v598, %v599
    %v601 = vrot.slane %v600, 2
    %v602 = vadd.f32 %v600, %v601
    %v603 = vrot.slane %v602, 1
    %v604 = vadd.f32 %v602, %v603
    %v605 = vmul.f32 %v604, %v213
    %v606 = vmul.f32 %v596, %v596
    %v607 = vsub.f32 %v605, %v606
    %v608 = vmax.f32 %v607, 0.0
    %v609 = vadd.f32 %v608, 1e-05
    %v610 = vrsqrt.pop %v609
    %v611 = vmul.f32 %v587, %v610
    %v612 = vmul.f32 %v596, %v611
    %v613 = vsub.f32 %v588, %v612
    %v614 = vlaneseq
    %v615 = vshrl.u32 %v614, 7
    %v616 = vsub.s32 0, %v615
    %v617 = vrot.slane %v611, %v616
    %v618 = vmul.f32 %v582, %v617
    %v619 = vlaneseq
    %v620 = vshrl.u32 %v619, 7
    %v621 = vsub.s32 0, %v620
    %v622 = vrot.slane %v613, %v621
    %v623 = vadd.f32 %v618, %v622
    %v624 = vmax.f32 %v623, 0.0
    %v625 = vpack.c.bf16 %v624, %v624
    %v626 = vld [vmem:[%s4 + $0x10] sm:$0xf]
    %v627 = vld [vmem:[%s4 + $0x14] sm:$0xf]
    %v630 = vunpack.c.l.b16 %v626
    %v631 = vunpack.c.l.b16 %v627
    %v632 = vpack.c.b16 %v631, %v630
    %v635 = vsel %vm92, %v625, 0
    %637 = vmatprep.subr.bf16.mxu0 0
    %638 = vmatpush1.bf16.msra.mxu0 %v632
    %639 = vmatprep.subr.bf16.mxu0 0
    %640 = vmatpush1.bf16.msra.mxu0 0
    %641 = vmatprep.subr.bf16.mxu0 0
    %642 = vmatpush1.bf16.msra.mxu0 0
    %643 = vmatprep.subr.bf16.mxu0 0
    %644 = vmatpush1.bf16.msra.mxu0 0
    %645 = vmatprep.subr.bf16.mxu0 0
    %646 = vmatpush1.bf16.msra.mxu0 0
    %647 = vmatprep.subr.bf16.mxu0 0
    %648 = vmatpush1.bf16.msra.mxu0 0
    %649 = vmatprep.subr.bf16.mxu0 0
    %650 = vmatpush1.bf16.msra.mxu0 0
    %651 = vmatprep.subr.bf16.mxu0 0
    %652 = vmatpush1.bf16.msra.mxu0 0
    %653 = vmatprep.subr.bf16.mxu0 0
    %654 = vmatpush1.bf16.msra.mxu0 0
    %655 = vmatprep.subr.bf16.mxu0 0
    %656 = vmatpush1.bf16.msra.mxu0 0
    %657 = vmatprep.subr.bf16.mxu0 0
    %658 = vmatpush1.bf16.msra.mxu0 0
    %659 = vmatprep.subr.bf16.mxu0 0
    %660 = vmatpush1.bf16.msra.mxu0 0
    %661 = vmatprep.subr.bf16.mxu0 0
    %662 = vmatpush1.bf16.msra.mxu0 0
    %663 = vmatprep.subr.bf16.mxu0 0
    %664 = vmatpush1.bf16.msra.mxu0 0
    %665 = vmatprep.subr.bf16.mxu0 0
    %666 = vmatpush1.bf16.msra.mxu0 0
    %667 = vmatprep.subr.bf16.mxu0 0
    %668 = vmatpush1.bf16.msra.mxu0 0
    %669 = vmatprep.mubr.bf16.mxu0 0
    %670 = vmatmul.mubr.bf16.gmra.mrb[0].mxu0 %v635
    %v671 = vpop.f32.mrb[0].mxu0
    %v672 = vadd.f32 0.0, %v671
    %v673 = vpop.f32.mrb[0].mxu0
    %v674 = vpop.f32.mrb[0].mxu0
    %v675 = vpop.f32.mrb[0].mxu0
    %676 = vdwg.mxu0
    %v677 = vld [vmem:[%s6 + $0x4] sm:$0x1]
    %v678 = vld [vmem:[%s6 + $0x5] sm:$0x1]
    %v679 = vsel %vm92, %v672, 0.0
    %v680 = vrot.slane %v679, 4
    %v681 = vadd.f32 %v679, %v680
    %v682 = vrot.slane %v681, 2
    %v683 = vadd.f32 %v681, %v682
    %v684 = vrot.slane %v683, 1
    %v685 = vadd.f32 %v683, %v684
    %v686 = vmul.f32 %v685, %v213
    %v687 = vmul.f32 %v672, %v672
    %v688 = vsel %vm92, %v687, 0.0
    %v689 = vrot.slane %v688, 4
    %v690 = vadd.f32 %v688, %v689
    %v691 = vrot.slane %v690, 2
    %v692 = vadd.f32 %v690, %v691
    %v693 = vrot.slane %v692, 1
    %v694 = vadd.f32 %v692, %v693
    %v695 = vmul.f32 %v694, %v213
    %v696 = vmul.f32 %v686, %v686
    %v697 = vsub.f32 %v695, %v696
    %v698 = vmax.f32 %v697, 0.0
    %v699 = vadd.f32 %v698, 1e-05
    %v700 = vrsqrt.pop %v699
    %v701 = vmul.f32 %v677, %v700
    %v702 = vmul.f32 %v686, %v701
    %v703 = vsub.f32 %v678, %v702
    %v704 = vlaneseq
    %v705 = vshrl.u32 %v704, 7
    %v706 = vsub.s32 0, %v705
    %v707 = vrot.slane %v701, %v706
    %v708 = vmul.f32 %v672, %v707
    %v709 = vlaneseq
    %v710 = vshrl.u32 %v709, 7
    %v711 = vsub.s32 0, %v710
    %v712 = vrot.slane %v703, %v711
    %v713 = vadd.f32 %v708, %v712
    %v714 = vadd.f32 %v713, %v534
    %v715 = vmax.f32 %v714, 0.0
    %v716 = vpack.c.bf16 %v715, %v715
    %v717 = vld [vmem:[%s4 + $0x18] sm:$0xf]
    %v718 = vld [vmem:[%s4 + $0x1c] sm:$0xf]
    %v719 = vld [vmem:[%s6 + $0x6] sm:$0x1]
    %v720 = vlaneseq
    %v721 = vshrl.u32 %v720, 7
    %v722 = vsub.s32 0, %v721
    %v723 = vrot.slane %v719, %v722
    %v726 = vunpack.c.l.b16 %v717
    %v727 = vunpack.c.l.b16 %v718
    %v728 = vpack.c.b16 %v727, %v726
    %v731 = vsel %vm92, %v716, 0
    %733 = vmatprep.subr.bf16.mxu0 0
    %734 = vmatpush1.bf16.msra.mxu0 %v728
    %735 = vmatprep.subr.bf16.mxu0 0
    %736 = vmatpush1.bf16.msra.mxu0 0
    %737 = vmatprep.subr.bf16.mxu0 0
    %738 = vmatpush1.bf16.msra.mxu0 0
    %739 = vmatprep.subr.bf16.mxu0 0
    %740 = vmatpush1.bf16.msra.mxu0 0
    %741 = vmatprep.subr.bf16.mxu0 0
    %742 = vmatpush1.bf16.msra.mxu0 0
    %743 = vmatprep.subr.bf16.mxu0 0
    %744 = vmatpush1.bf16.msra.mxu0 0
    %745 = vmatprep.subr.bf16.mxu0 0
    %746 = vmatpush1.bf16.msra.mxu0 0
    %747 = vmatprep.subr.bf16.mxu0 0
    %748 = vmatpush1.bf16.msra.mxu0 0
    %749 = vmatprep.subr.bf16.mxu0 0
    %750 = vmatpush1.bf16.msra.mxu0 0
    %751 = vmatprep.subr.bf16.mxu0 0
    %752 = vmatpush1.bf16.msra.mxu0 0
    %753 = vmatprep.subr.bf16.mxu0 0
    %754 = vmatpush1.bf16.msra.mxu0 0
    %755 = vmatprep.subr.bf16.mxu0 0
    %756 = vmatpush1.bf16.msra.mxu0 0
    %757 = vmatprep.subr.bf16.mxu0 0
    %758 = vmatpush1.bf16.msra.mxu0 0
    %759 = vmatprep.subr.bf16.mxu0 0
    %760 = vmatpush1.bf16.msra.mxu0 0
    %761 = vmatprep.subr.bf16.mxu0 0
    %762 = vmatpush1.bf16.msra.mxu0 0
    %763 = vmatprep.subr.bf16.mxu0 0
    %764 = vmatpush1.bf16.msra.mxu0 0
    %765 = vmatprep.mubr.bf16.mxu0 0
    %766 = vmatmul.mubr.bf16.gmra.mrb[0].mxu0 %v731
    %v767 = vpop.f32.mrb[0].mxu0
    %v768 = vadd.f32 %v723, %v767
    %v769 = vpop.f32.mrb[0].mxu0
    %v770 = vpop.f32.mrb[0].mxu0
    %v771 = vpop.f32.mrb[0].mxu0
    %772 = vdwg.mxu0
    %v773 = vmul.f32 %v768, 1.442695
    %v774 = vpow.pop %v773
    %v775 = vld [vmem:[%s2] sm:$0xff]
    %777 = vrot.lane.b32.xlu0 %v775, 8
    %v778 = vpop.permute.xlu0 %777
    %v780 = vmul.f32 %v774, %v778
    %782 = vrot.lane.b32.xlu0 %v780, 120
    %v783 = vpop.permute.xlu0 %782
    %v785 = vadd.f32 %v768, %v783
    %vm786 = vcmask 64512
    %787 = vst.msk [vmem:[#allocation2] sm:$0xff] %vm786, %v785
    %v788 = vmul.f32 %v774, %v774
    %v789 = vmul.f32 %v768, %v768
    %791 = vrot.lane.b32.xlu0 %v789, 8
    %v792 = vpop.permute.xlu0 %791
    %v794 = vadd.f32 %v788, %v792
    %v795 = vsub.f32 %v794, %v768
    %v796 = vsub.f32 %v795, 0.5
    %798 = vrot.lane.b32.xlu0 %v796, 120
    %v799 = vpop.permute.xlu0 %798
    %v801 = vsel %vm786, %v799, 0.0
    %802 = vadd.xlane.f32.xlu0 %v801
    %v803 = vpop.xlane.xlu0 %802
    %v804 = vrot.slane %v803, 4
    %v805 = vadd.f32 %v803, %v804
    %v806 = vrot.slane %v805, 2
    %v807 = vadd.f32 %v805, %v806
    %v808 = vrot.slane %v807, 1
    %v809 = vadd.f32 %v807, %v808
    %s810 = vtos %v809
    %v811 = vstv %s810
    %vm812 = vcmask 0
    %813 = vst.msk [vmem:[#allocation4] sm:$0x1] %vm812, %v811
    // Predicated region
    $region30: #{tpu_custom_call.1} parent=1 // pred_check
      _
    $region31: #{tpu_custom_call.1} parent=1 // pred_check_branch
      %815 = sbr.rel (0) target = $region33
    $region32: #{tpu_custom_call.1} parent=1 // pred_region
      %s817 = ssub.s32 128, 128
      %818 = vsyncadd [#allocation3], %s817
      %s820 = sshll.u32 [#allocation2], 4
      %s821 = int_to_ptr.vmem [resolvable:$true] %s820
      %823 = dma.vmem_to_hbm [thread:$0]  %s821, 128, %s7, [#allocation3]
    $region33: #{tpu_custom_call.1} parent=1 // pred_fallthru
      _
    // Predicated region
    $region34: #{tpu_custom_call.1} parent=1 // pred_check
      _
    $region35: #{tpu_custom_call.1} parent=1 // pred_check_branch
      %825 = sbr.rel (0) target = $region37
    $region36: #{tpu_custom_call.1} parent=1 // pred_region
      %s827 = ssub.s32 16, 16
      %828 = vsyncadd [#allocation5], %s827
      %s830 = sshll.u32 [#allocation4], 4
      %s831 = int_to_ptr.vmem [resolvable:$true] %s830
      %833 = dma.vmem_to_hbm [thread:$0]  %s831, 16, %s8, [#allocation5]
    $region37: #{tpu_custom_call.1} parent=1 // pred_fallthru
      _
    // Predicated region
    $region38: #{tpu_custom_call.1} parent=1 // pred_check
      _
    $region39: #{tpu_custom_call.1} parent=1 // pred_check_branch
      %835 = sbr.rel (0) target = $region41
    $region40: #{tpu_custom_call.1} parent=1 // pred_region
      %836 = dma.done [#allocation3], 128
    $region41: #{tpu_custom_call.1} parent=1 // pred_fallthru
      _
    // Predicated region
    $region42: #{tpu_custom_call.1} parent=1 // pred_check
      _
    $region43: #{tpu_custom_call.1} parent=1 // pred_check_branch
      %838 = sbr.rel (0) target = $region45
    $region44: #{tpu_custom_call.1} parent=1 // pred_region
      %839 = dma.done [#allocation5], 16
    $region45: #{tpu_custom_call.1} parent=1 // pred_fallthru
      _
    %840 = vsyncpa [#allocation3], 1
    %841 = vsyncpa [#allocation5], 1

</llo_original>
